<compile_context>
chip_gen: v6e
topology: v6e:2x2x1
jax: 0.10.0
libtpu: 0.0.40
codegen_flags: <defaults>
</compile_context>

<pallas_src>
import functools

import numpy as np
import jax
import jax.numpy as jnp
from jax import lax
from jax.experimental import pallas as pl
from jax.experimental.pallas import tpu as pltpu

# Keep XLA-reference matmuls at full f32 precision so the pure-JAX reference
# matches the in-kernel MXU matmuls tightly (important because of the floor()).
jax.config.update("jax_default_matmul_precision", "highest")


# ----------------------------------------------------------------------------
# helpers
# ----------------------------------------------------------------------------
def _pick_block(dim: int, preferred: int) -> int:
    """Largest legal block: `preferred` if it tiles evenly, else the full dim.

    Full-array extents are always legal w.r.t. the (8,128) rule, so odd sizes
    (e.g. seq_len=10) never break lowering; big problems still get tiled.
    """
    return preferred if (dim % preferred == 0) else dim


def build_positional_encoding_table(model_dim: int, max_seq_len: int) -> jnp.ndarray:
    """Sinusoidal table, exactly as in PositionalEncoding.__init__."""
    pe = np.array(
        [
            [pos / np.power(10000, 2.0 * (j // 2) / model_dim) for j in range(model_dim)]
            for pos in range(max_seq_len)
        ]
    )
    pe[:, 0::2] = np.sin(pe[:, 0::2])
    pe[:, 1::2] = np.cos(pe[:, 1::2])
    return jnp.asarray(pe, dtype=jnp.float32)


# ----------------------------------------------------------------------------
# Kernel 1: fused word-embedding gather + positional-encoding add
#   (word_embedding(decoder_inputs) + pos_embedding(batch, seq_len))
# ----------------------------------------------------------------------------
def _embed_add_pe_kernel(ids_ref, emb_ref, pe_ref, out_ref):
    # ids_ref: (B*L, 1) int32   token ids (flattened)
    # emb_ref: (V, D)   f32     embedding table
    # pe_ref : (L, D)   f32     PE rows 0..L-1
    # out_ref: (B, L, D) f32
    B, L, D = out_ref.shape
    V = emb_ref.shape[0]
    ids = ids_ref[...]                                            # (B*L, 1)
    # One-hot matmul gather: fully vectorized, MXU-friendly, no dynamic gather.
    # TODO(synk): for large vocabularies use a scalar-prefetch DMA row gather
    # instead of the one-hot matmul.
    onehot = (ids == lax.broadcasted_iota(jnp.int32, (B * L, V), 1)).astype(jnp.float32)
    tok = jnp.dot(onehot, emb_ref[...], preferred_element_type=jnp.float32)  # (B*L, D)
    # Batch broadcast of the PE rows happens in-register; the (B, L, D) slab is
    # written exactly once (no standalone PE broadcast is ever materialized).
    out_ref[...] = tok.reshape(B, L, D) + pe_ref[...][None, :, :]


def embed_add_positional(token_ids, emb_table, pe_table):
    B, L = token_ids.shape
    V, D = emb_table.shape
    ids2d = token_ids.reshape(B * L, 1).astype(jnp.int32)
    pe_rows = pe_table[:L]  # full-array block => legal for any L
    return pl.pallas_call(
        _embed_add_pe_kernel,
        out_shape=jax.ShapeDtypeStruct((B, L, D), jnp.float32),
        grid_spec=pltpu.PrefetchScalarGridSpec(
            num_scalar_prefetch=0,
            grid=(1,),
            in_specs=[
                pl.BlockSpec((B * L, 1), lambda i: (0, 0)),
                pl.BlockSpec((V, D), lambda i: (0, 0)),
                pl.BlockSpec((L, D), lambda i: (0, 0)),
            ],
            out_specs=pl.BlockSpec((B, L, D), lambda i: (0, 0, 0)),
        ),
        compiler_params=pltpu.CompilerParams(dimension_semantics=("arbitrary",)),
    )(ids2d, emb_table, pe_rows)


# ----------------------------------------------------------------------------
# Kernel 2: linear layer (x @ W + b), optional fused ReLU  (nn.Linear / FFN w1)
# ----------------------------------------------------------------------------
def _linear_kernel(x_ref, w_ref, b_ref, o_ref, acc_ref, *, activation):
    @pl.when(pl.program_id(2) == 0)
    def _init():
        acc_ref[...] = jnp.zeros_like(acc_ref)

    acc_ref[...] += jnp.dot(x_ref[...], w_ref[...], preferred_element_type=jnp.float32)

    @pl.when(pl.program_id(2) == pl.num_programs(2) - 1)
    def _finalize():
        out = acc_ref[...] + b_ref[...]
        if activation == "relu":
            out = jnp.maximum(out, 0.0)
        o_ref[...] = out.astype(o_ref.dtype)


def linear(x, w, b, activation=None):
    M, K = x.shape
    K2, N = w.shape
    assert K == K2
    tm = _pick_block(M, 256)
    tn = _pick_block(N, 256)
    tk = _pick_block(K, 512)
    kernel = functools.partial(_linear_kernel, activation=activation)
    return pl.pallas_call(
        kernel,
        out_shape=jax.ShapeDtypeStruct((M, N), jnp.float32),
        grid_spec=pltpu.PrefetchScalarGridSpec(
            num_scalar_prefetch=0,
            grid=(M // tm, N // tn, K // tk),
            in_specs=[
                pl.BlockSpec((tm, tk), lambda i, j, k: (i, k)),
                pl.BlockSpec((tk, tn), lambda i, j, k: (k, j)),
                pl.BlockSpec((1, tn), lambda i, j, k: (0, j)),
            ],
            out_specs=pl.BlockSpec((tm, tn), lambda i, j, k: (i, j)),
            scratch_shapes=[pltpu.VMEM((tm, tn), jnp.float32)],
        ),
        compiler_params=pltpu.CompilerParams(
            dimension_semantics=("parallel", "parallel", "arbitrary")
        ),
    )(x, w, b.reshape(1, N))


# ----------------------------------------------------------------------------
# Kernel 3: ScaledDotProductAttention (bmm, floor-div scaling, mask, softmax, bmm)
# ----------------------------------------------------------------------------
def _attention_kernel(q_ref, k_ref, v_ref, m_ref, ctx_ref, attn_ref, *, scale):
    q = q_ref[0]          # (Lq, hd)
    k = k_ref[0]          # (Lk, hd)
    v = v_ref[0]          # (Lk, hd)
    mask = m_ref[0]       # (Lq, Lk) int32 (nonzero => masked)
    s = lax.dot_general(q, k, (((1,), (1,)), ((), ())),
                        preferred_element_type=jnp.float32)          # Q @ K^T
    s = jnp.floor(s / scale)                       # torch: attention // scaled
    s = jnp.where(mask != 0, -jnp.inf, s)          # masked_fill_(mask, -inf)
    s_max = jnp.max(s, axis=-1, keepdims=True)
    e = jnp.exp(s - s_max)
    p = e / jnp.sum(e, axis=-1, keepdims=True)     # softmax(dim=-1)
    attn_ref[0] = p
    ctx_ref[0] = jnp.dot(p, v, preferred_element_type=jnp.float32)


def scaled_dot_product_attention(Q, K, V, mask_i32, scale):
    BH, Lq, hd = Q.shape
    Lk = K.shape[1]
    kernel = functools.partial(_attention_kernel, scale=float(scale))
    ctx, attn = pl.pallas_call(
        kernel,
        out_shape=(
            jax.ShapeDtypeStruct((BH, Lq, hd), jnp.float32),
            jax.ShapeDtypeStruct((BH, Lq, Lk), jnp.float32),
        ),
        grid_spec=pltpu.PrefetchScalarGridSpec(
            num_scalar_prefetch=0,
            grid=(BH,),
            in_specs=[
                pl.BlockSpec((1, Lq, hd), lambda b: (b, 0, 0)),
                pl.BlockSpec((1, Lk, hd), lambda b: (b, 0, 0)),
                pl.BlockSpec((1, Lk, hd), lambda b: (b, 0, 0)),
                pl.BlockSpec((1, Lq, Lk), lambda b: (b, 0, 0)),
            ],
            out_specs=[
                pl.BlockSpec((1, Lq, hd), lambda b: (b, 0, 0)),
                pl.BlockSpec((1, Lq, Lk), lambda b: (b, 0, 0)),
            ],
        ),
        compiler_params=pltpu.CompilerParams(dimension_semantics=("parallel",)),
    )(Q, K, V, mask_i32)
    return ctx, attn


# ----------------------------------------------------------------------------
# Kernel 4: fused residual-add + LayerNorm
# ----------------------------------------------------------------------------
def _add_ln_kernel(res_ref, x_ref, g_ref, b_ref, o_ref, *, eps):
    y = res_ref[...] + x_ref[...]
    mean = jnp.mean(y, axis=-1, keepdims=True)
    var = jnp.mean((y - mean) ** 2, axis=-1, keepdims=True)
    o_ref[...] = (y - mean) * lax.rsqrt(var + eps) * g_ref[...] + b_ref[...]


def add_layer_norm(residual, x, gamma, beta, eps=1e-5):
    M, D = x.shape
    tm = _pick_block(M, 256)
    kernel = functools.partial(_add_ln_kernel, eps=eps)
    return pl.pallas_call(
        kernel,
        out_shape=jax.ShapeDtypeStruct((M, D), jnp.float32),
        grid_spec=pltpu.PrefetchScalarGridSpec(
            num_scalar_prefetch=0,
            grid=(M // tm,),
            in_specs=[
                pl.BlockSpec((tm, D), lambda i: (i, 0)),
                pl.BlockSpec((tm, D), lambda i: (i, 0)),
                pl.BlockSpec((1, D), lambda i: (0, 0)),
                pl.BlockSpec((1, D), lambda i: (0, 0)),
            ],
            out_specs=pl.BlockSpec((tm, D), lambda i: (i, 0)),
        ),
        compiler_params=pltpu.CompilerParams(dimension_semantics=("parallel",)),
    )(residual, x, gamma.reshape(1, D), beta.reshape(1, D))


# ----------------------------------------------------------------------------
# Module glue (masks, reshapes) — mirrors the PyTorch code exactly
# ----------------------------------------------------------------------------
def padding_mask(seq_k, seq_q, pad_id):
    B, Lk = seq_k.shape
    Lq = seq_q.shape[1]
    pm = seq_k == pad_id
    return jnp.broadcast_to(pm[:, None, :], (B, Lq, Lk))


def sequence_mask(seq):
    B, L = seq.shape
    m = jnp.triu(jnp.ones((L, L), jnp.int32), k=1)
    return jnp.broadcast_to(m[None], (B, L, L))


def multi_head_attention(p, key, value, query, attn_mask, num_heads):
    B, Lq, D = query.shape
    Lk = key.shape[1]
    hd = D // num_heads
    residual = query
    q = linear(query.reshape(B * Lq, D), p["wq"], p["bq"])
    k = linear(key.reshape(B * Lk, D), p["wk"], p["bk"])
    v = linear(value.reshape(B * Lk, D), p["wv"], p["bv"])
    # torch: .view(batch*heads, -1, head_dim)  (naive reshape, no head transpose)
    Q = q.reshape(B * num_heads, -1, hd)
    K = k.reshape(B * num_heads, -1, hd)
    V = v.reshape(B * num_heads, -1, hd)
    mask = jnp.tile(attn_mask, (num_heads, 1, 1)).astype(jnp.int32)  # torch .repeat(H,1,1)
    scale = hd ** 0.5
    context, attention = scaled_dot_product_attention(Q, K, V, mask, scale)
    context = context.reshape(B, -1, num_heads * hd)                 # torch .view
    out = linear(context.reshape(B * Lq, D), p["wo"], p["bo"])
    out = add_layer_norm(residual.reshape(B * Lq, D), out, p["ln_g"], p["ln_b"])
    return out.reshape(B, Lq, D), attention


def position_wise_ffn(p, z):
    B, L, D = z.shape
    z2 = z.reshape(B * L, D)
    h = linear(z2, p["w1"], p["b1"], activation="relu")
    o = linear(h, p["w2"], p["b2"])
    out = add_layer_norm(z2, o, p["ln_g"], p["ln_b"])
    return out.reshape(B, L, D)


def decoder_layer(p, dec_in, enc_out, self_mask, ctx_mask, num_heads):
    out, self_attn = multi_head_attention(p["self_attn"], dec_in, dec_in, dec_in,
                                          self_mask, num_heads)
    out, ctx_attn = multi_head_attention(p["ctx_attn"], enc_out, enc_out, out,
                                         ctx_mask, num_heads)
    out = position_wise_ffn(p["ffn"], out)
    return out, self_attn, ctx_attn


def decoder_forward(params, decoder_inputs, encoder_inputs, encoder_output,
                    *, num_heads, src_pad_id, tgt_pad_id):
    B, L = decoder_inputs.shape
    output = embed_add_positional(decoder_inputs, params["word_emb"], params["pos_emb"])
    self_pad = padding_mask(decoder_inputs, decoder_inputs, tgt_pad_id)
    seq_m = sequence_mask(decoder_inputs)
    self_mask = (self_pad.astype(jnp.int32) + seq_m) > 0
    ctx_mask = padding_mask(encoder_inputs, decoder_inputs, src_pad_id)
    self_attns, ctx_attns = [], []
    for lp in params["layers"]:
        output, sa, ca = decoder_layer(lp, output, encoder_output,
                                       self_mask, ctx_mask, num_heads)
        self_attns.append(sa)
        ctx_attns.append(ca)
    return output, self_attns, ctx_attns


# ----------------------------------------------------------------------------
# Pure-JAX reference (no Pallas) for correctness checking
# ----------------------------------------------------------------------------
def _softmax_last(x):
    m = jnp.max(x, axis=-1, keepdims=True)
    e = jnp.exp(x - m)
    return e / jnp.sum(e, axis=-1, keepdims=True)


def _layer_norm_ref(y, g, b, eps=1e-5):
    mean = jnp.mean(y, axis=-1, keepdims=True)
    var = jnp.mean((y - mean) ** 2, axis=-1, keepdims=True)
    return (y - mean) * lax.rsqrt(var + eps) * g + b


def _mha_ref(p, key, value, query, attn_mask, num_heads):
    B, Lq, D = query.shape
    Lk = key.shape[1]
    hd = D // num_heads
    residual = query
    q = query.reshape(-1, D) @ p["wq"] + p["bq"]
    k = key.reshape(-1, D) @ p["wk"] + p["bk"]
    v = value.reshape(-1, D) @ p["wv"] + p["bv"]
    Q = q.reshape(B * num_heads, -1, hd)
    K = k.reshape(B * num_heads, -1, hd)
    V = v.reshape(B * num_heads, -1, hd)
    mask = jnp.tile(attn_mask, (num_heads, 1, 1))
    scale = hd ** 0.5
    s = jnp.einsum("bqd,bkd->bqk", Q, K)
    s = jnp.floor(s / scale)
    s = jnp.where(mask, -jnp.inf, s)
    attn = _softmax_last(s)
    ctx = jnp.einsum("bqk,bkd->bqd", attn, V)
    out = ctx.reshape(B, -1, D).reshape(-1, D) @ p["wo"] + p["bo"]
    out = _layer_norm_ref(residual.reshape(-1, D) + out, p["ln_g"], p["ln_b"])
    return out.reshape(B, Lq, D), attn


def _ffn_ref(p, z):
    B, L, D = z.shape
    z2 = z.reshape(-1, D)
    h = jnp.maximum(z2 @ p["w1"] + p["b1"], 0.0)
    o = h @ p["w2"] + p["b2"]
    return _layer_norm_ref(z2 + o, p["ln_g"], p["ln_b"]).reshape(B, L, D)


def decoder_reference(params, decoder_inputs, encoder_inputs, encoder_output,
                      *, num_heads, src_pad_id, tgt_pad_id):
    B, L = decoder_inputs.shape
    output = params["word_emb"][decoder_inputs] + params["pos_emb"][:L][None, :, :]
    self_pad = padding_mask(decoder_inputs, decoder_inputs, tgt_pad_id)
    seq_m = sequence_mask(decoder_inputs)
    self_mask = (self_pad.astype(jnp.int32) + seq_m) > 0
    ctx_mask = padding_mask(encoder_inputs, decoder_inputs, src_pad_id)
    self_attns, ctx_attns = [], []
    for lp in params["layers"]:
        output, sa = _mha_ref(lp["self_attn"], output, output, output, self_mask, num_heads)
        output, ca = _mha_ref(lp["ctx_attn"], encoder_output, encoder_output, output,
                              ctx_mask, num_heads)
        output = _ffn_ref(lp["ffn"], output)
        self_attns.append(sa)
        ctx_attns.append(ca)
    return output, self_attns, ctx_attns


# ----------------------------------------------------------------------------
# Parameter init
# ----------------------------------------------------------------------------
def _init_dense(key, fan_in, fan_out):
    kw, kb = jax.random.split(key)
    w = jax.random.normal(kw, (fan_in, fan_out), jnp.float32) / np.sqrt(fan_in)
    b = 0.01 * jax.random.normal(kb, (fan_out,), jnp.float32)
    return w.astype(jnp.float32), b.astype(jnp.float32)


def _init_mha(key, D):
    ks = jax.random.split(key, 4)
    wq, bq = _init_dense(ks[0], D, D)
    wk, bk = _init_dense(ks[1], D, D)
    wv, bv = _init_dense(ks[2], D, D)
    wo, bo = _init_dense(ks[3], D, D)
    return dict(wq=wq, bq=bq, wk=wk, bk=bk, wv=wv, bv=bv, wo=wo, bo=bo,
                ln_g=jnp.ones((D,), jnp.float32), ln_b=jnp.zeros((D,), jnp.float32))


def _init_ffn(key, D, F):
    k1, k2 = jax.random.split(key)
    w1, b1 = _init_dense(k1, D, F)
    w2, b2 = _init_dense(k2, F, D)
    return dict(w1=w1, b1=b1, w2=w2, b2=b2,
                ln_g=jnp.ones((D,), jnp.float32), ln_b=jnp.zeros((D,), jnp.float32))


def init_decoder_params(key, vocab_size, max_seq_len, model_dim, num_heads,
                        ffn_dim, num_layers):
    k_emb, k_rest = jax.random.split(key)
    word_emb = 0.5 * jax.random.normal(k_emb, (vocab_size, model_dim), jnp.float32)
    layer_keys = jax.random.split(k_rest, num_layers)
    layers = []
    for lk in layer_keys:
        k1, k2, k3 = jax.random.split(lk, 3)
        layers.append(dict(self_attn=_init_mha(k1, model_dim),
                           ctx_attn=_init_mha(k2, model_dim),
                           ffn=_init_ffn(k3, model_dim, ffn_dim)))
    return dict(word_emb=word_emb,
                pos_emb=build_positional_encoding_table(model_dim, max_seq_len),
                layers=layers)


# ----------------------------------------------------------------------------
# demo
# ----------------------------------------------------------------------------
if __name__ == "__main__":
    vocab_size, max_seq_len = 50, 16
    model_dim, num_heads, ffn_dim, num_layers = 32, 4, 64, 2
    B, L_dec, L_enc = 2, 8, 8
    src_pad_id = tgt_pad_id = 0

    root = jax.random.PRNGKey(0)
    k_params, k_dec, k_enc, k_encout = jax.random.split(root, 4)

    params = init_decoder_params(k_params, vocab_size, max_seq_len, model_dim,
                                 num_heads, ffn_dim, num_layers)

    dec_ids = jax.random.randint(k_dec, (B, L_dec), 1, vocab_size).astype(jnp.int32)
    dec_ids = dec_ids.at[1, -1].set(tgt_pad_id)      # exercise target padding mask
    enc_ids = jax.random.randint(k_enc, (B, L_enc), 1, vocab_size).astype(jnp.int32)
    enc_ids = enc_ids.at[0, -1].set(src_pad_id)      # exercise source padding mask
    enc_out = 0.5 * jax.random.normal(k_encout, (B, L_enc, model_dim), jnp.float32)

    out, self_attns, ctx_attns = decoder_forward(
        params, dec_ids, enc_ids, enc_out,
        num_heads=num_heads, src_pad_id=src_pad_id, tgt_pad_id=tgt_pad_id)
    out, self_attns, ctx_attns = jax.block_until_ready((out, self_attns, ctx_attns))

    ref_out, ref_sa, ref_ca = decoder_reference(
        params, dec_ids, enc_ids, enc_out,
        num_heads=num_heads, src_pad_id=src_pad_id, tgt_pad_id=tgt_pad_id)

    assert out.shape == (B, L_dec, model_dim)
    assert out.dtype == jnp.float32
    assert len(self_attns) == num_layers and len(ctx_attns) == num_layers
    assert np.isfinite(np.asarray(out)).all()
    np.testing.assert_allclose(np.asarray(out), np.asarray(ref_out), rtol=1e-3, atol=1e-3)
    for a, r in zip(self_attns + ctx_attns, ref_sa + ref_ca):
        assert a.shape == r.shape
        np.testing.assert_allclose(np.asarray(a), np.asarray(r), rtol=1e-3, atol=1e-3)

    print("KERNEL_OK")
</pallas_src>

<mosaic_0001>
module attributes {stable_mosaic.version = 11 : i64} {
  func.func @_embed_add_pe_kernel(%arg0: i32, %arg1: memref<16x1xi32, #tpu.memory_space<vmem>>, %arg2: memref<50x32xf32, #tpu.memory_space<vmem>>, %arg3: memref<8x32xf32, #tpu.memory_space<vmem>>, %arg4: memref<2x8x32xf32, #tpu.memory_space<vmem>>) attributes {dimension_semantics = [#tpu.dimension_semantics<arbitrary>], iteration_bounds = array<i64: 1>, scalar_prefetch = 0 : i64, scratch_operands = 0 : i64, tpu.core_type = #tpu.core_type<tc>, window_params = [{pipeline_mode = #tpu.pipeline_mode<synchronous>, transform_indices = @transform_0, window_bounds = array<i64: 16, 1>}, {pipeline_mode = #tpu.pipeline_mode<synchronous>, transform_indices = @transform_1, window_bounds = array<i64: 50, 32>}, {pipeline_mode = #tpu.pipeline_mode<synchronous>, transform_indices = @transform_2, window_bounds = array<i64: 8, 32>}, {pipeline_mode = #tpu.pipeline_mode<synchronous>, transform_indices = @transform_3, window_bounds = array<i64: 2, 8, 32>}]} {
    %c0 = arith.constant 0 : index
    %c0_0 = arith.constant 0 : index
    %0 = vector.load %arg1[%c0, %c0_0] : memref<16x1xi32, #tpu.memory_space<vmem>>, vector<16x1xi32>
    %1 = tpu.iota {dimensions = array<i32: 1>} : vector<16x50xi32>
    %2 = vector.broadcast %0 : vector<16x1xi32> to vector<16x50xi32>
    %3 = arith.cmpi eq, %2, %1 : vector<16x50xi32>
    %4 = arith.extui %3 : vector<16x50xi1> to vector<16x50xi32>
    %5 = arith.sitofp %4 : vector<16x50xi32> to vector<16x50xf32>
    %c0_1 = arith.constant 0 : index
    %c0_2 = arith.constant 0 : index
    %6 = vector.load %arg2[%c0_1, %c0_2] : memref<50x32xf32, #tpu.memory_space<vmem>>, vector<50x32xf32>
    %cst = arith.constant dense<0.000000e+00> : vector<16x32xf32>
    %7 = tpu.matmul %5, %6, %cst {dimension_numbers = #tpu.dot_dimension_numbers<[1], [0], [0], [1], [0, 0, 1, 1], [], []>, precision = #tpu.contract_precision<fp32>} : vector<16x50xf32>, vector<50x32xf32>, vector<16x32xf32> -> vector<16x32xf32>
    %8 = vector.shape_cast %7 : vector<16x32xf32> to vector<2x8x32xf32>
    %c0_3 = arith.constant 0 : index
    %c0_4 = arith.constant 0 : index
    %9 = vector.load %arg3[%c0_3, %c0_4] : memref<8x32xf32, #tpu.memory_space<vmem>>, vector<8x32xf32>
    %10 = vector.shape_cast %9 : vector<8x32xf32> to vector<1x8x32xf32>
    %11 = vector.broadcast %10 : vector<1x8x32xf32> to vector<2x8x32xf32>
    %12 = arith.addf %8, %11 : vector<2x8x32xf32>
    %c0_5 = arith.constant 0 : index
    %c0_6 = arith.constant 0 : index
    %c0_7 = arith.constant 0 : index
    %13 = vector.load %arg4[%c0_5, %c0_6, %c0_7] : memref<2x8x32xf32, #tpu.memory_space<vmem>>, vector<2x8x32xf32>
    tpu.vector_store %arg4[%c0_5, %c0_6, %c0_7], %12 {strides = array<i32>} : memref<2x8x32xf32, #tpu.memory_space<vmem>>, vector<2x8x32xf32>,
    return
  }
  func.func @transform_0(%arg0: i32) -> (i32, i32) {
    %c0_i32 = arith.constant 0 : i32
    %c0_i32_0 = arith.constant 0 : i32
    %c0_i32_1 = arith.constant 0 : i32
    return %c0_i32, %c0_i32_0 : i32, i32
  }
  func.func @transform_1(%arg0: i32) -> (i32, i32) {
    %c0_i32 = arith.constant 0 : i32
    %c0_i32_0 = arith.constant 0 : i32
    %c0_i32_1 = arith.constant 0 : i32
    return %c0_i32, %c0_i32_0 : i32, i32
  }
  func.func @transform_2(%arg0: i32) -> (i32, i32) {
    %c0_i32 = arith.constant 0 : i32
    %c0_i32_0 = arith.constant 0 : i32
    %c0_i32_1 = arith.constant 0 : i32
    return %c0_i32, %c0_i32_0 : i32, i32
  }
  func.func @transform_3(%arg0: i32) -> (i32, i32, i32) {
    %c0_i32 = arith.constant 0 : i32
    %c0_i32_0 = arith.constant 0 : i32
    %c0_i32_1 = arith.constant 0 : i32
    %c0_i32_2 = arith.constant 0 : i32
    return %c0_i32, %c0_i32_0, %c0_i32_1 : i32, i32, i32
  }
}

</mosaic_0001>

<llo_original>
// kernel: tpu_custom_call.1
$region0: #{tpu_custom_call.1}
  #allocation0 [shape = 'u32[]', space=smem, size = 0x4, offset = 0x4, fixed_abs, tag = 'smem constant byte address 0x4 - core index']
  #allocation1 [shape = 'u32[144,128]{1,0:T(1,128)}', space=vmem, size = 0x12000, scoped, tag = 'internal scratch']
  %s0 = inlined_call_operand.vmem [shape: s32[16,1], index: 0, kind: input, shape index: {}]
  %s1 = inlined_call_operand.vmem [shape: f32[50,32], index: 1, kind: input, shape index: {}]
  %s2 = inlined_call_operand.vmem [shape: f32[8,32], index: 2, kind: input, shape index: {}]
  %s3 = inlined_call_operand.hbm [shape: f32[2,8,32], index: 3, kind: output, shape index: {}]
  %s4 = sld [smem:[#allocation0]]
  $region22: #{tpu_custom_call.1} parent=0
    _
  %s6 = ssub.s32 1, %s4
  %s7 = scalar_select 0, %s6, %s4
  $region1: #{tpu_custom_call.1} parent=0
    #allocation2 [shape = 'u8[8192]{0}', space=vmem, size = 0x2000, scoped, tag = 'output window, operand 0, single buffered']
    #allocation3 [shape = 's32[1]{0}', space=sflag, size = 0x4, scoped, tag = 'scoped memory for tpu_custom_call.1']
    %8 = vsyncpa [#allocation3], 0
    // Predicated region
    $region2: #{tpu_custom_call.1} parent=1 // pred_check
      _
    $region3: #{tpu_custom_call.1} parent=1 // pred_check_branch
      %10 = sbr.rel (0) target = $region5
    $region4: #{tpu_custom_call.1} parent=1 // pred_region
      _
    $region5: #{tpu_custom_call.1} parent=1 // pred_fallthru
      _
    // Predicated region
    $region6: #{tpu_custom_call.1} parent=1 // pred_check
      _
    $region7: #{tpu_custom_call.1} parent=1 // pred_check_branch
      %12 = sbr.rel (0) target = $region9
    $region8: #{tpu_custom_call.1} parent=1 // pred_region
      _
    $region9: #{tpu_custom_call.1} parent=1 // pred_fallthru
      _
    // Predicated region
    $region10: #{tpu_custom_call.1} parent=1 // pred_check
      _
    $region11: #{tpu_custom_call.1} parent=1 // pred_check_branch
      %14 = sbr.rel (0) target = $region13
    $region12: #{tpu_custom_call.1} parent=1 // pred_region
      _
    $region13: #{tpu_custom_call.1} parent=1 // pred_fallthru
      _
    %v15 = vld [vmem:[%s0] sm:$0xff]
    %v16 = vld [vmem:[%s0 + $0x8] sm:$0xff]
    %v17 = vlaneseq
    %v18 = vand.u32 %v17, 127
    %19 = vset.pattern.permute.xlu0 0
    %20 = vperm.xlu0 %19, %v15
    %v21 = vpop.permute.xlu0 %20
    %22 = vset.pattern.permute.xlu0 0
    %23 = vperm.xlu0 %22, %v16
    %v24 = vpop.permute.xlu0 %23
    %vm25 = vcmp.eq.s32.totalorder %v21, %v18
    %vm26 = vcmp.eq.s32.totalorder %v24, %v18
    %v27 = vsel %vm25, 1, 0
    %v28 = vsel %vm26, 1, 0
    %v29 = vcvt.s32.f32 %v27
    %v30 = vcvt.s32.f32 %v28
    %v31 = vld [vmem:[%s1] sm:$0xff]
    %v32 = vld [vmem:[%s1 + $0x8] sm:$0xff]
    %v33 = vld [vmem:[%s1 + $0x10] sm:$0xff]
    %v34 = vld [vmem:[%s1 + $0x18] sm:$0xff]
    %v35 = vld [vmem:[%s1 + $0x20] sm:$0xff]
    %v36 = vld [vmem:[%s1 + $0x28] sm:$0xff]
    %v37 = vld [vmem:[%s1 + $0x30] sm:$0x3]
    %vm38 = vcmask 408576
    %v40 = vsel %vm38, %v29, 0
    %v43 = vsel %vm38, %v30, 0
    %vm45 = vcmask 1041408
    %v47 = vsel %vm45, %v37, 0
    %49 = vmatprep.subr.mxu0 0.0
    %50 = vmatpush1.msra.mxu0 0.0
    %51 = vmatprep.subr.mxu0 0.0
    %52 = vmatpush1.msra.mxu0 0.0
    %53 = vmatprep.subr.mxu0 0.0
    %54 = vmatpush1.msra.mxu0 0.0
    %55 = vmatprep.subr.mxu0 0.0
    %56 = vmatpush1.msra.mxu0 0.0
    %57 = vmatprep.subr.mxu0 0.0
    %58 = vmatpush1.msra.mxu0 0.0
    %59 = vmatprep.subr.mxu0 0.0
    %60 = vmatpush1.msra.mxu0 0.0
    %61 = vmatprep.subr.mxu0 0.0
    %62 = vmatpush1.msra.mxu0 0.0
    %63 = vmatprep.subr.mxu0 0.0
    %64 = vmatpush1.msra.mxu0 0.0
    %65 = vmatprep.subr.mxu0 0.0
    %66 = vmatpush1.msra.mxu0 0.0
    %67 = vmatprep.subr.mxu0 0.0
    %v68 = vand.u32 %v47, 4294901760
    %69 = vmatpush1.msra.mxu0 %v68
    %70 = vmatprep.subr.mxu0 0.0
    %v71 = vand.u32 %v36, 4294901760
    %72 = vmatpush1.msra.mxu0 %v71
    %73 = vmatprep.subr.mxu0 0.0
    %v74 = vand.u32 %v35, 4294901760
    %75 = vmatpush1.msra.mxu0 %v74
    %76 = vmatprep.subr.mxu0 0.0
    %v77 = vand.u32 %v34, 4294901760
    %78 = vmatpush1.msra.mxu0 %v77
    %79 = vmatprep.subr.mxu0 0.0
    %v80 = vand.u32 %v33, 4294901760
    %81 = vmatpush1.msra.mxu0 %v80
    %82 = vmatprep.subr.mxu0 0.0
    %v83 = vand.u32 %v32, 4294901760
    %84 = vmatpush1.msra.mxu0 %v83
    %85 = vmatprep.subr.mxu0 0.0
    %v86 = vand.u32 %v31, 4294901760
    %87 = vmatpush1.msra.mxu0 %v86
    %88 = vmatprep.subr.mxu0 0.0
    %89 = vmatpush2.msra.mxu0 0.0
    %90 = vmatprep.subr.mxu0 0.0
    %91 = vmatpush2.msra.mxu0 0.0
    %92 = vmatprep.subr.mxu0 0.0
    %93 = vmatpush2.msra.mxu0 0.0
    %94 = vmatprep.subr.mxu0 0.0
    %95 = vmatpush2.msra.mxu0 0.0
    %96 = vmatprep.subr.mxu0 0.0
    %97 = vmatpush2.msra.mxu0 0.0
    %98 = vmatprep.subr.mxu0 0.0
    %99 = vmatpush2.msra.mxu0 0.0
    %100 = vmatprep.subr.mxu0 0.0
    %101 = vmatpush2.msra.mxu0 0.0
    %102 = vmatprep.subr.mxu0 0.0
    %103 = vmatpush2.msra.mxu0 0.0
    %104 = vmatprep.subr.mxu0 0.0
    %105 = vmatpush2.msra.mxu0 0.0
    %106 = vmatprep.subr.mxu0 0.0
    %107 = vmatpush2.msra.mxu0 0.0
    %108 = vmatprep.subr.mxu0 0.0
    %109 = vmatpush2.msra.mxu0 0.0
    %110 = vmatprep.subr.mxu0 0.0
    %111 = vmatpush2.msra.mxu0 0.0
    %112 = vmatprep.subr.mxu0 0.0
    %113 = vmatpush2.msra.mxu0 0.0
    %114 = vmatprep.subr.mxu0 0.0
    %115 = vmatpush2.msra.mxu0 0.0
    %116 = vmatprep.subr.mxu0 0.0
    %117 = vmatpush2.msra.mxu0 0.0
    %118 = vmatprep.subr.mxu0 0.0
    %119 = vmatpush2.msra.mxu0 0.0
    %120 = vmatprep.mubr.f32.mxu0 0.0
    %v121 = vand.u32 %v40, 4294901760
    %v122 = vsub.f32 %v40, %v121
    %v123 = vand.u32 %v122, 4294901760
    %v124 = vsub.f32 %v122, %v123
    %v125 = vand.u32 %v124, 4294901760
    %126 = vmatmul.mubr.f32.gmra.mxu0 %v125
    %v127 = vpop.f32.mrf.mxu0
    %v128 = vadd.f32 0.0, %v127
    %v129 = vpop.f32.mrf.mxu0
    %130 = vmatprep.mubr.f32.mxu0 0.0
    %v131 = vand.u32 %v43, 4294901760
    %v132 = vsub.f32 %v43, %v131
    %v133 = vand.u32 %v132, 4294901760
    %v134 = vsub.f32 %v132, %v133
    %v135 = vand.u32 %v134, 4294901760
    %136 = vmatmul.mubr.f32.gmra.mxu0 %v135
    %v137 = vpop.f32.mrf.mxu0
    %v138 = vadd.f32 0.0, %v137
    %v139 = vpop.f32.mrf.mxu0
    %140 = vdwg.mxu0
    %141 = vmatprep.subr.mxu0 0.0
    %142 = vmatpush1.msra.mxu0 0.0
    %143 = vmatprep.subr.mxu0 0.0
    %144 = vmatpush1.msra.mxu0 0.0
    %145 = vmatprep.subr.mxu0 0.0
    %146 = vmatpush1.msra.mxu0 0.0
    %147 = vmatprep.subr.mxu0 0.0
    %148 = vmatpush1.msra.mxu0 0.0
    %149 = vmatprep.subr.mxu0 0.0
    %150 = vmatpush1.msra.mxu0 0.0
    %151 = vmatprep.subr.mxu0 0.0
    %152 = vmatpush1.msra.mxu0 0.0
    %153 = vmatprep.subr.mxu0 0.0
    %154 = vmatpush1.msra.mxu0 0.0
    %155 = vmatprep.subr.mxu0 0.0
    %156 = vmatpush1.msra.mxu0 0.0
    %157 = vmatprep.subr.mxu0 0.0
    %158 = vmatpush1.msra.mxu0 0.0
    %159 = vmatprep.subr.mxu0 0.0
    %v160 = vand.u32 %v47, 4294901760
    %v161 = vsub.f32 %v47, %v160
    %v162 = vand.u32 %v161, 4294901760
    %v163 = vsub.f32 %v161, %v162
    %v164 = vand.u32 %v163, 4294901760
    %165 = vmatpush1.msra.mxu0 %v164
    %166 = vmatprep.subr.mxu0 0.0
    %v167 = vand.u32 %v36, 4294901760
    %v168 = vsub.f32 %v36, %v167
    %v169 = vand.u32 %v168, 4294901760
    %v170 = vsub.f32 %v168, %v169
    %v171 = vand.u32 %v170, 4294901760
    %172 = vmatpush1.msra.mxu0 %v171
    %173 = vmatprep.subr.mxu0 0.0
    %v174 = vand.u32 %v35, 4294901760
    %v175 = vsub.f32 %v35, %v174
    %v176 = vand.u32 %v175, 4294901760
    %v177 = vsub.f32 %v175, %v176
    %v178 = vand.u32 %v177, 4294901760
    %179 = vmatpush1.msra.mxu0 %v178
    %180 = vmatprep.subr.mxu0 0.0
    %v181 = vand.u32 %v34, 4294901760
    %v182 = vsub.f32 %v34, %v181
    %v183 = vand.u32 %v182, 4294901760
    %v184 = vsub.f32 %v182, %v183
    %v185 = vand.u32 %v184, 4294901760
    %186 = vmatpush1.msra.mxu0 %v185
    %187 = vmatprep.subr.mxu0 0.0
    %v188 = vand.u32 %v33, 4294901760
    %v189 = vsub.f32 %v33, %v188
    %v190 = vand.u32 %v189, 4294901760
    %v191 = vsub.f32 %v189, %v190
    %v192 = vand.u32 %v191, 4294901760
    %193 = vmatpush1.msra.mxu0 %v192
    %194 = vmatprep.subr.mxu0 0.0
    %v195 = vand.u32 %v32, 4294901760
    %v196 = vsub.f32 %v32, %v195
    %v197 = vand.u32 %v196, 4294901760
    %v198 = vsub.f32 %v196, %v197
    %v199 = vand.u32 %v198, 4294901760
    %200 = vmatpush1.msra.mxu0 %v199
    %201 = vmatprep.subr.mxu0 0.0
    %v202 = vand.u32 %v31, 4294901760
    %v203 = vsub.f32 %v31, %v202
    %v204 = vand.u32 %v203, 4294901760
    %v205 = vsub.f32 %v203, %v204
    %v206 = vand.u32 %v205, 4294901760
    %207 = vmatpush1.msra.mxu0 %v206
    %208 = vmatprep.subr.mxu0 0.0
    %209 = vmatpush2.msra.mxu0 0.0
    %210 = vmatprep.subr.mxu0 0.0
    %211 = vmatpush2.msra.mxu0 0.0
    %212 = vmatprep.subr.mxu0 0.0
    %213 = vmatpush2.msra.mxu0 0.0
    %214 = vmatprep.subr.mxu0 0.0
    %215 = vmatpush2.msra.mxu0 0.0
    %216 = vmatprep.subr.mxu0 0.0
    %217 = vmatpush2.msra.mxu0 0.0
    %218 = vmatprep.subr.mxu0 0.0
    %219 = vmatpush2.msra.mxu0 0.0
    %220 = vmatprep.subr.mxu0 0.0
    %221 = vmatpush2.msra.mxu0 0.0
    %222 = vmatprep.subr.mxu0 0.0
    %223 = vmatpush2.msra.mxu0 0.0
    %224 = vmatprep.subr.mxu0 0.0
    %225 = vmatpush2.msra.mxu0 0.0
    %226 = vmatprep.subr.mxu0 0.0
    %227 = vmatpush2.msra.mxu0 0.0
    %228 = vmatprep.subr.mxu0 0.0
    %229 = vmatpush2.msra.mxu0 0.0
    %230 = vmatprep.subr.mxu0 0.0
    %231 = vmatpush2.msra.mxu0 0.0
    %232 = vmatprep.subr.mxu0 0.0
    %233 = vmatpush2.msra.mxu0 0.0
    %234 = vmatprep.subr.mxu0 0.0
    %235 = vmatpush2.msra.mxu0 0.0
    %236 = vmatprep.subr.mxu0 0.0
    %237 = vmatpush2.msra.mxu0 0.0
    %238 = vmatprep.subr.mxu0 0.0
    %239 = vmatpush2.msra.mxu0 0.0
    %240 = vmatprep.mubr.f32.mxu0 0.0
    %v241 = vand.u32 %v40, 4294901760
    %242 = vmatmul.mubr.f32.gmra.mxu0 %v241
    %v243 = vpop.f32.mrf.mxu0
    %v244 = vadd.f32 %v128, %v243
    %v245 = vpop.f32.mrf.mxu0
    %246 = vmatprep.mubr.f32.mxu0 0.0
    %v247 = vand.u32 %v43, 4294901760
    %248 = vmatmul.mubr.f32.gmra.mxu0 %v247
    %v249 = vpop.f32.mrf.mxu0
    %v250 = vadd.f32 %v138, %v249
    %v251 = vpop.f32.mrf.mxu0
    %252 = vdwg.mxu0
    %253 = vmatprep.subr.mxu0 0.0
    %254 = vmatpush1.msra.mxu0 0.0
    %255 = vmatprep.subr.mxu0 0.0
    %256 = vmatpush1.msra.mxu0 0.0
    %257 = vmatprep.subr.mxu0 0.0
    %258 = vmatpush1.msra.mxu0 0.0
    %259 = vmatprep.subr.mxu0 0.0
    %260 = vmatpush1.msra.mxu0 0.0
    %261 = vmatprep.subr.mxu0 0.0
    %262 = vmatpush1.msra.mxu0 0.0
    %263 = vmatprep.subr.mxu0 0.0
    %264 = vmatpush1.msra.mxu0 0.0
    %265 = vmatprep.subr.mxu0 0.0
    %266 = vmatpush1.msra.mxu0 0.0
    %267 = vmatprep.subr.mxu0 0.0
    %268 = vmatpush1.msra.mxu0 0.0
    %269 = vmatprep.subr.mxu0 0.0
    %270 = vmatpush1.msra.mxu0 0.0
    %271 = vmatprep.subr.mxu0 0.0
    %v272 = vand.u32 %v47, 4294901760
    %v273 = vsub.f32 %v47, %v272
    %274 = vmatpush1.msra.mxu0 %v273
    %275 = vmatprep.subr.mxu0 0.0
    %v276 = vand.u32 %v36, 4294901760
    %v277 = vsub.f32 %v36, %v276
    %278 = vmatpush1.msra.mxu0 %v277
    %279 = vmatprep.subr.mxu0 0.0
    %v280 = vand.u32 %v35, 4294901760
    %v281 = vsub.f32 %v35, %v280
    %282 = vmatpush1.msra.mxu0 %v281
    %283 = vmatprep.subr.mxu0 0.0
    %v284 = vand.u32 %v34, 4294901760
    %v285 = vsub.f32 %v34, %v284
    %286 = vmatpush1.msra.mxu0 %v285
    %287 = vmatprep.subr.mxu0 0.0
    %v288 = vand.u32 %v33, 4294901760
    %v289 = vsub.f32 %v33, %v288
    %290 = vmatpush1.msra.mxu0 %v289
    %291 = vmatprep.subr.mxu0 0.0
    %v292 = vand.u32 %v32, 4294901760
    %v293 = vsub.f32 %v32, %v292
    %294 = vmatpush1.msra.mxu0 %v293
    %295 = vmatprep.subr.mxu0 0.0
    %v296 = vand.u32 %v31, 4294901760
    %v297 = vsub.f32 %v31, %v296
    %298 = vmatpush1.msra.mxu0 %v297
    %299 = vmatprep.subr.mxu0 0.0
    %300 = vmatpush2.msra.mxu0 0.0
    %301 = vmatprep.subr.mxu0 0.0
    %302 = vmatpush2.msra.mxu0 0.0
    %303 = vmatprep.subr.mxu0 0.0
    %304 = vmatpush2.msra.mxu0 0.0
    %305 = vmatprep.subr.mxu0 0.0
    %306 = vmatpush2.msra.mxu0 0.0
    %307 = vmatprep.subr.mxu0 0.0
    %308 = vmatpush2.msra.mxu0 0.0
    %309 = vmatprep.subr.mxu0 0.0
    %310 = vmatpush2.msra.mxu0 0.0
    %311 = vmatprep.subr.mxu0 0.0
    %312 = vmatpush2.msra.mxu0 0.0
    %313 = vmatprep.subr.mxu0 0.0
    %314 = vmatpush2.msra.mxu0 0.0
    %315 = vmatprep.subr.mxu0 0.0
    %316 = vmatpush2.msra.mxu0 0.0
    %317 = vmatprep.subr.mxu0 0.0
    %318 = vmatpush2.msra.mxu0 0.0
    %319 = vmatprep.subr.mxu0 0.0
    %320 = vmatpush2.msra.mxu0 0.0
    %321 = vmatprep.subr.mxu0 0.0
    %322 = vmatpush2.msra.mxu0 0.0
    %323 = vmatprep.subr.mxu0 0.0
    %324 = vmatpush2.msra.mxu0 0.0
    %325 = vmatprep.subr.mxu0 0.0
    %326 = vmatpush2.msra.mxu0 0.0
    %327 = vmatprep.subr.mxu0 0.0
    %328 = vmatpush2.msra.mxu0 0.0
    %329 = vmatprep.subr.mxu0 0.0
    %330 = vmatpush2.msra.mxu0 0.0
    %331 = vmatprep.mubr.f32.mxu0 0.0
    %v332 = vand.u32 %v40, 4294901760
    %v333 = vsub.f32 %v40, %v332
    %334 = vmatmul.mubr.f32.gmra.mxu0 %v333
    %v335 = vpop.f32.mrf.mxu0
    %v336 = vadd.f32 %v244, %v335
    %v337 = vpop.f32.mrf.mxu0
    %338 = vmatprep.mubr.f32.mxu0 0.0
    %v339 = vand.u32 %v43, 4294901760
    %v340 = vsub.f32 %v43, %v339
    %341 = vmatmul.mubr.f32.gmra.mxu0 %v340
    %v342 = vpop.f32.mrf.mxu0
    %v343 = vadd.f32 %v250, %v342
    %v344 = vpop.f32.mrf.mxu0
    %345 = vdwg.mxu0
    %346 = vmatprep.subr.mxu0 0.0
    %347 = vmatpush1.msra.mxu0 0.0
    %348 = vmatprep.subr.mxu0 0.0
    %349 = vmatpush1.msra.mxu0 0.0
    %350 = vmatprep.subr.mxu0 0.0
    %351 = vmatpush1.msra.mxu0 0.0
    %352 = vmatprep.subr.mxu0 0.0
    %353 = vmatpush1.msra.mxu0 0.0
    %354 = vmatprep.subr.mxu0 0.0
    %355 = vmatpush1.msra.mxu0 0.0
    %356 = vmatprep.subr.mxu0 0.0
    %357 = vmatpush1.msra.mxu0 0.0
    %358 = vmatprep.subr.mxu0 0.0
    %359 = vmatpush1.msra.mxu0 0.0
    %360 = vmatprep.subr.mxu0 0.0
    %361 = vmatpush1.msra.mxu0 0.0
    %362 = vmatprep.subr.mxu0 0.0
    %363 = vmatpush1.msra.mxu0 0.0
    %364 = vmatprep.subr.mxu0 0.0
    %v365 = vand.u32 %v47, 4294901760
    %366 = vmatpush1.msra.mxu0 %v365
    %367 = vmatprep.subr.mxu0 0.0
    %v368 = vand.u32 %v36, 4294901760
    %369 = vmatpush1.msra.mxu0 %v368
    %370 = vmatprep.subr.mxu0 0.0
    %v371 = vand.u32 %v35, 4294901760
    %372 = vmatpush1.msra.mxu0 %v371
    %373 = vmatprep.subr.mxu0 0.0
    %v374 = vand.u32 %v34, 4294901760
    %375 = vmatpush1.msra.mxu0 %v374
    %376 = vmatprep.subr.mxu0 0.0
    %v377 = vand.u32 %v33, 4294901760
    %378 = vmatpush1.msra.mxu0 %v377
    %379 = vmatprep.subr.mxu0 0.0
    %v380 = vand.u32 %v32, 4294901760
    %381 = vmatpush1.msra.mxu0 %v380
    %382 = vmatprep.subr.mxu0 0.0
    %v383 = vand.u32 %v31, 4294901760
    %384 = vmatpush1.msra.mxu0 %v383
    %385 = vmatprep.subr.mxu0 0.0
    %386 = vmatpush2.msra.mxu0 0.0
    %387 = vmatprep.subr.mxu0 0.0
    %388 = vmatpush2.msra.mxu0 0.0
    %389 = vmatprep.subr.mxu0 0.0
    %390 = vmatpush2.msra.mxu0 0.0
    %391 = vmatprep.subr.mxu0 0.0
    %392 = vmatpush2.msra.mxu0 0.0
    %393 = vmatprep.subr.mxu0 0.0
    %394 = vmatpush2.msra.mxu0 0.0
    %395 = vmatprep.subr.mxu0 0.0
    %396 = vmatpush2.msra.mxu0 0.0
    %397 = vmatprep.subr.mxu0 0.0
    %398 = vmatpush2.msra.mxu0 0.0
    %399 = vmatprep.subr.mxu0 0.0
    %400 = vmatpush2.msra.mxu0 0.0
    %401 = vmatprep.subr.mxu0 0.0
    %402 = vmatpush2.msra.mxu0 0.0
    %403 = vmatprep.subr.mxu0 0.0
    %404 = vmatpush2.msra.mxu0 0.0
    %405 = vmatprep.subr.mxu0 0.0
    %406 = vmatpush2.msra.mxu0 0.0
    %407 = vmatprep.subr.mxu0 0.0
    %408 = vmatpush2.msra.mxu0 0.0
    %409 = vmatprep.subr.mxu0 0.0
    %410 = vmatpush2.msra.mxu0 0.0
    %411 = vmatprep.subr.mxu0 0.0
    %412 = vmatpush2.msra.mxu0 0.0
    %413 = vmatprep.subr.mxu0 0.0
    %414 = vmatpush2.msra.mxu0 0.0
    %415 = vmatprep.subr.mxu0 0.0
    %416 = vmatpush2.msra.mxu0 0.0
    %417 = vmatprep.mubr.f32.mxu0 0.0
    %v418 = vand.u32 %v40, 4294901760
    %v419 = vsub.f32 %v40, %v418
    %v420 = vand.u32 %v419, 4294901760
    %421 = vmatmul.mubr.f32.gmra.mxu0 %v420
    %v422 = vpop.f32.mrf.mxu0
    %v423 = vadd.f32 %v336, %v422
    %v424 = vpop.f32.mrf.mxu0
    %425 = vmatprep.mubr.f32.mxu0 0.0
    %v426 = vand.u32 %v43, 4294901760
    %v427 = vsub.f32 %v43, %v426
    %v428 = vand.u32 %v427, 4294901760
    %429 = vmatmul.mubr.f32.gmra.mxu0 %v428
    %v430 = vpop.f32.mrf.mxu0
    %v431 = vadd.f32 %v343, %v430
    %v432 = vpop.f32.mrf.mxu0
    %433 = vdwg.mxu0
    %434 = vmatprep.subr.mxu0 0.0
    %435 = vmatpush1.msra.mxu0 0.0
    %436 = vmatprep.subr.mxu0 0.0
    %437 = vmatpush1.msra.mxu0 0.0
    %438 = vmatprep.subr.mxu0 0.0
    %439 = vmatpush1.msra.mxu0 0.0
    %440 = vmatprep.subr.mxu0 0.0
    %441 = vmatpush1.msra.mxu0 0.0
    %442 = vmatprep.subr.mxu0 0.0
    %443 = vmatpush1.msra.mxu0 0.0
    %444 = vmatprep.subr.mxu0 0.0
    %445 = vmatpush1.msra.mxu0 0.0
    %446 = vmatprep.subr.mxu0 0.0
    %447 = vmatpush1.msra.mxu0 0.0
    %448 = vmatprep.subr.mxu0 0.0
    %449 = vmatpush1.msra.mxu0 0.0
    %450 = vmatprep.subr.mxu0 0.0
    %451 = vmatpush1.msra.mxu0 0.0
    %452 = vmatprep.subr.mxu0 0.0
    %v453 = vand.u32 %v47, 4294901760
    %v454 = vsub.f32 %v47, %v453
    %v455 = vand.u32 %v454, 4294901760
    %456 = vmatpush1.msra.mxu0 %v455
    %457 = vmatprep.subr.mxu0 0.0
    %v458 = vand.u32 %v36, 4294901760
    %v459 = vsub.f32 %v36, %v458
    %v460 = vand.u32 %v459, 4294901760
    %461 = vmatpush1.msra.mxu0 %v460
    %462 = vmatprep.subr.mxu0 0.0
    %v463 = vand.u32 %v35, 4294901760
    %v464 = vsub.f32 %v35, %v463
    %v465 = vand.u32 %v464, 4294901760
    %466 = vmatpush1.msra.mxu0 %v465
    %467 = vmatprep.subr.mxu0 0.0
    %v468 = vand.u32 %v34, 4294901760
    %v469 = vsub.f32 %v34, %v468
    %v470 = vand.u32 %v469, 4294901760
    %471 = vmatpush1.msra.mxu0 %v470
    %472 = vmatprep.subr.mxu0 0.0
    %v473 = vand.u32 %v33, 4294901760
    %v474 = vsub.f32 %v33, %v473
    %v475 = vand.u32 %v474, 4294901760
    %476 = vmatpush1.msra.mxu0 %v475
    %477 = vmatprep.subr.mxu0 0.0
    %v478 = vand.u32 %v32, 4294901760
    %v479 = vsub.f32 %v32, %v478
    %v480 = vand.u32 %v479, 4294901760
    %481 = vmatpush1.msra.mxu0 %v480
    %482 = vmatprep.subr.mxu0 0.0
    %v483 = vand.u32 %v31, 4294901760
    %v484 = vsub.f32 %v31, %v483
    %v485 = vand.u32 %v484, 4294901760
    %486 = vmatpush1.msra.mxu0 %v485
    %487 = vmatprep.subr.mxu0 0.0
    %488 = vmatpush2.msra.mxu0 0.0
    %489 = vmatprep.subr.mxu0 0.0
    %490 = vmatpush2.msra.mxu0 0.0
    %491 = vmatprep.subr.mxu0 0.0
    %492 = vmatpush2.msra.mxu0 0.0
    %493 = vmatprep.subr.mxu0 0.0
    %494 = vmatpush2.msra.mxu0 0.0
    %495 = vmatprep.subr.mxu0 0.0
    %496 = vmatpush2.msra.mxu0 0.0
    %497 = vmatprep.subr.mxu0 0.0
    %498 = vmatpush2.msra.mxu0 0.0
    %499 = vmatprep.subr.mxu0 0.0
    %500 = vmatpush2.msra.mxu0 0.0
    %501 = vmatprep.subr.mxu0 0.0
    %502 = vmatpush2.msra.mxu0 0.0
    %503 = vmatprep.subr.mxu0 0.0
    %504 = vmatpush2.msra.mxu0 0.0
    %505 = vmatprep.subr.mxu0 0.0
    %506 = vmatpush2.msra.mxu0 0.0
    %507 = vmatprep.subr.mxu0 0.0
    %508 = vmatpush2.msra.mxu0 0.0
    %509 = vmatprep.subr.mxu0 0.0
    %510 = vmatpush2.msra.mxu0 0.0
    %511 = vmatprep.subr.mxu0 0.0
    %512 = vmatpush2.msra.mxu0 0.0
    %513 = vmatprep.subr.mxu0 0.0
    %514 = vmatpush2.msra.mxu0 0.0
    %515 = vmatprep.subr.mxu0 0.0
    %516 = vmatpush2.msra.mxu0 0.0
    %517 = vmatprep.subr.mxu0 0.0
    %518 = vmatpush2.msra.mxu0 0.0
    %519 = vmatprep.mubr.f32.mxu0 0.0
    %v520 = vand.u32 %v40, 4294901760
    %521 = vmatmul.mubr.f32.gmra.mxu0 %v520
    %v522 = vpop.f32.mrf.mxu0
    %v523 = vadd.f32 %v423, %v522
    %v524 = vpop.f32.mrf.mxu0
    %525 = vmatprep.mubr.f32.mxu0 0.0
    %v526 = vand.u32 %v43, 4294901760
    %527 = vmatmul.mubr.f32.gmra.mxu0 %v526
    %v528 = vpop.f32.mrf.mxu0
    %v529 = vadd.f32 %v431, %v528
    %v530 = vpop.f32.mrf.mxu0
    %531 = vdwg.mxu0
    %532 = vmatprep.subr.mxu0 0.0
    %533 = vmatpush1.msra.mxu0 0.0
    %534 = vmatprep.subr.mxu0 0.0
    %535 = vmatpush1.msra.mxu0 0.0
    %536 = vmatprep.subr.mxu0 0.0
    %537 = vmatpush1.msra.mxu0 0.0
    %538 = vmatprep.subr.mxu0 0.0
    %539 = vmatpush1.msra.mxu0 0.0
    %540 = vmatprep.subr.mxu0 0.0
    %541 = vmatpush1.msra.mxu0 0.0
    %542 = vmatprep.subr.mxu0 0.0
    %543 = vmatpush1.msra.mxu0 0.0
    %544 = vmatprep.subr.mxu0 0.0
    %545 = vmatpush1.msra.mxu0 0.0
    %546 = vmatprep.subr.mxu0 0.0
    %547 = vmatpush1.msra.mxu0 0.0
    %548 = vmatprep.subr.mxu0 0.0
    %549 = vmatpush1.msra.mxu0 0.0
    %550 = vmatprep.subr.mxu0 0.0
    %v551 = vand.u32 %v47, 4294901760
    %552 = vmatpush1.msra.mxu0 %v551
    %553 = vmatprep.subr.mxu0 0.0
    %v554 = vand.u32 %v36, 4294901760
    %555 = vmatpush1.msra.mxu0 %v554
    %556 = vmatprep.subr.mxu0 0.0
    %v557 = vand.u32 %v35, 4294901760
    %558 = vmatpush1.msra.mxu0 %v557
    %559 = vmatprep.subr.mxu0 0.0
    %v560 = vand.u32 %v34, 4294901760
    %561 = vmatpush1.msra.mxu0 %v560
    %562 = vmatprep.subr.mxu0 0.0
    %v563 = vand.u32 %v33, 4294901760
    %564 = vmatpush1.msra.mxu0 %v563
    %565 = vmatprep.subr.mxu0 0.0
    %v566 = vand.u32 %v32, 4294901760
    %567 = vmatpush1.msra.mxu0 %v566
    %568 = vmatprep.subr.mxu0 0.0
    %v569 = vand.u32 %v31, 4294901760
    %570 = vmatpush1.msra.mxu0 %v569
    %571 = vmatprep.subr.mxu0 0.0
    %572 = vmatpush2.msra.mxu0 0.0
    %573 = vmatprep.subr.mxu0 0.0
    %574 = vmatpush2.msra.mxu0 0.0
    %575 = vmatprep.subr.mxu0 0.0
    %576 = vmatpush2.msra.mxu0 0.0
    %577 = vmatprep.subr.mxu0 0.0
    %578 = vmatpush2.msra.mxu0 0.0
    %579 = vmatprep.subr.mxu0 0.0
    %580 = vmatpush2.msra.mxu0 0.0
    %581 = vmatprep.subr.mxu0 0.0
    %582 = vmatpush2.msra.mxu0 0.0
    %583 = vmatprep.subr.mxu0 0.0
    %584 = vmatpush2.msra.mxu0 0.0
    %585 = vmatprep.subr.mxu0 0.0
    %586 = vmatpush2.msra.mxu0 0.0
    %587 = vmatprep.subr.mxu0 0.0
    %588 = vmatpush2.msra.mxu0 0.0
    %589 = vmatprep.subr.mxu0 0.0
    %590 = vmatpush2.msra.mxu0 0.0
    %591 = vmatprep.subr.mxu0 0.0
    %592 = vmatpush2.msra.mxu0 0.0
    %593 = vmatprep.subr.mxu0 0.0
    %594 = vmatpush2.msra.mxu0 0.0
    %595 = vmatprep.subr.mxu0 0.0
    %596 = vmatpush2.msra.mxu0 0.0
    %597 = vmatprep.subr.mxu0 0.0
    %598 = vmatpush2.msra.mxu0 0.0
    %599 = vmatprep.subr.mxu0 0.0
    %600 = vmatpush2.msra.mxu0 0.0
    %601 = vmatprep.subr.mxu0 0.0
    %602 = vmatpush2.msra.mxu0 0.0
    %603 = vmatprep.mubr.f32.mxu0 0.0
    %v604 = vand.u32 %v40, 4294901760
    %605 = vmatmul.mubr.f32.gmra.mxu0 %v604
    %v606 = vpop.f32.mrf.mxu0
    %v607 = vadd.f32 %v523, %v606
    %v608 = vpop.f32.mrf.mxu0
    %609 = vmatprep.mubr.f32.mxu0 0.0
    %v610 = vand.u32 %v43, 4294901760
    %611 = vmatmul.mubr.f32.gmra.mxu0 %v610
    %v612 = vpop.f32.mrf.mxu0
    %v613 = vadd.f32 %v529, %v612
    %v614 = vpop.f32.mrf.mxu0
    %615 = vdwg.mxu0
    %v616 = vld [vmem:[%s2] sm:$0xff]
    %v617 = vadd.f32 %v607, %v616
    %v618 = vadd.f32 %v613, %v616
    %vm619 = vcmask 261120
    %620 = vst.msk [vmem:[#allocation2] sm:$0xff] %vm619, %v617
    %621 = vst.msk [vmem:[#allocation2 + $0x8] sm:$0xff] %vm619, %v618
    // Predicated region
    $region14: #{tpu_custom_call.1} parent=1 // pred_check
      _
    $region15: #{tpu_custom_call.1} parent=1 // pred_check_branch
      %623 = sbr.rel (0) target = $region17
    $region16: #{tpu_custom_call.1} parent=1 // pred_region
      %s625 = ssub.s32 256, 256
      %626 = vsyncadd [#allocation3], %s625
      %s627 = sshll.u32 [#allocation2], 4
      %s628 = int_to_ptr.vmem [resolvable:$true] %s627
      %633 = dma.vmem_to_hbm [thread:$0]  %s628, 256, %s3, [#allocation3], 128, 128, 8
    $region17: #{tpu_custom_call.1} parent=1 // pred_fallthru
      _
    // Predicated region
    $region18: #{tpu_custom_call.1} parent=1 // pred_check
      _
    $region19: #{tpu_custom_call.1} parent=1 // pred_check_branch
      %635 = sbr.rel (0) target = $region21
    $region20: #{tpu_custom_call.1} parent=1 // pred_region
      %636 = dma.done [#allocation3], 256
    $region21: #{tpu_custom_call.1} parent=1 // pred_fallthru
      _
    %637 = vsyncpa [#allocation3], 1

</llo_original>
